<compile_context>
chip_gen: v7x
topology: tpu7x:2x2x1
jax: 0.10.0
libtpu: 0.0.40
codegen_flags: <defaults>
</compile_context>

<pallas_src>
import jax
import jax.numpy as jnp
from jax.experimental import pallas as pl
from jax.experimental.pallas import tpu as pltpu


def _quant_generate_kernel(x_ref, w_ref, logits_ref, tok_ref):
    """Single-invocation fused kernel (entire problem is VMEM resident).

    x_ref      : (BS, H) float32   -- "input_ids" flattened to (batch*seq, hidden)
    w_ref      : (H, V)  bfloat16  -- synthetic lm_head weight
    logits_ref : (BS, V) float32   -- synthetic decode-step logits (V lane-dense)
    tok_ref    : (1, BS) int32     -- greedy "generated" token ids (long axis on lanes)
    """
    x = x_ref[...]                                                     # (BS, H) f32

    # --- per-tensor quint8 MinMax "calibration", fused in-kernel (saves a
    #     separate XLA reduction / extra HBM pass).  Kept 2-D (1,1): no rank-0.
    x_max = jnp.max(x, axis=1, keepdims=True)                          # (BS, 1) lane reduce
    x_max = jnp.maximum(jnp.max(x_max, axis=0, keepdims=True), 0.0)    # (1, 1)
    x_min = jnp.min(x, axis=1, keepdims=True)                          # (BS, 1)
    x_min = jnp.minimum(jnp.min(x_min, axis=0, keepdims=True), 0.0)    # (1, 1)
    scale = jnp.maximum((x_max - x_min) / 255.0, 1e-8)                 # (1, 1)
    inv_scale = 1.0 / scale                                            # ONE divide total
    zp = jnp.clip(jnp.round(-x_min * inv_scale), 0.0, 255.0)           # (1, 1)

    # --- QuantStub fake-quant: q = clamp(round(x/scale)+zp, 0, 255); dq = (q-zp)*scale.
    #     x * inv_scale (broadcast multiply) instead of per-element divide.
    q = jnp.clip(jnp.round(x * inv_scale) + zp, 0.0, 255.0)            # (BS, H)
    dq = (q - zp) * scale                                              # (BS, H) f32

    # --- synthetic stand-in for base_model.generate: one greedy decode step.
    # TODO(synk): a real base_model.generate (arbitrary HF model, KV-cache,
    # autoregressive sampling loop) has no clean static Pallas equivalent.
    # bf16 x bf16 -> f32 is the MXU-native path on v5e/v6e/v7x (no int MXU on v7x).
    logits = jnp.dot(dq.astype(jnp.bfloat16), w_ref[...],
                     preferred_element_type=jnp.float32)               # (BS, V)
    logits_ref[...] = logits

    # Greedy token ids, written with the long axis last (lane-dense store).
    tok_ref[...] = jnp.argmax(logits[None, :, :], axis=-1).astype(jnp.int32)   # (1, BS)


def quantized_model_forward(input_ids, lm_head_w, attention_mask=None):
    """Pallas implementation of QuantizedModel.forward.

    input_ids     : (B, S, H) float32  -- float tensor fed to QuantStub
    lm_head_w     : (H, V)    float32  -- synthetic lm_head weight (cast to bf16 here)
    attention_mask: ignored (single synthetic decode step does not mask); kept
                    for signature parity with the PyTorch module.
    Returns (logits, greedy_tokens).  The original PyTorch forward discards its
    result (returns None); we return tensors so the kernel can be blocked on.
    The dequantized input is intentionally NOT written back to HBM.
    """
    del attention_mask
    B, S, H = input_ids.shape
    Hw, V = lm_head_w.shape
    assert H == Hw
    BS = B * S

    x2d = input_ids.reshape(BS, H).astype(jnp.float32)     # fold batch into matmul M dim
    w_bf16 = lm_head_w.astype(jnp.bfloat16)                # half the weight DMA bytes

    grid_spec = pltpu.PrefetchScalarGridSpec(
        num_scalar_prefetch=0,
        grid=(1,),                                         # single step: no per-step overhead
        in_specs=[
            pl.BlockSpec((BS, H), lambda i: (0, 0)),       # input slab (full extent)
            pl.BlockSpec((H, V), lambda i: (0, 0)),        # bf16 lm_head weight
        ],
        out_specs=[
            pl.BlockSpec((BS, V), lambda i: (0, 0)),       # logits, V=128 lane-dense
            pl.BlockSpec((1, BS), lambda i: (0, 0)),       # tokens, long axis last
        ],
    )

    out_shapes = (
        jax.ShapeDtypeStruct((BS, V), jnp.float32),
        jax.ShapeDtypeStruct((1, BS), jnp.int32),
    )

    logits2d, tok2d = pl.pallas_call(
        _quant_generate_kernel,
        out_shape=out_shapes,
        grid_spec=grid_spec,
        compiler_params=pltpu.CompilerParams(
            dimension_semantics=("arbitrary",)),
    )(x2d, w_bf16)

    return logits2d.reshape(B, S, V), tok2d.reshape(B, S)


if __name__ == "__main__":
    # Small shapes: batch=2, seq=8, hidden=32, vocab=128 (lane-dense).
    B, S, H, V = 2, 8, 32, 128

    key = jax.random.PRNGKey(0)
    k_x, k_w = jax.random.split(key)

    # "input_ids" as the float tensor fed to QuantStub (the original module
    # literally quantizes the ids tensor; we keep values float so the affine
    # quantization is meaningful).
    input_ids = jax.random.uniform(k_x, (B, S, H), dtype=jnp.float32,
                                   minval=-2.0, maxval=2.0)
    attention_mask = jnp.ones((B, S), dtype=jnp.float32)

    # Deterministic synthetic lm_head weight for the stand-in generate step.
    lm_head_w = (jax.random.normal(k_w, (H, V), dtype=jnp.float32)
                 * (1.0 / jnp.sqrt(H)))

    logits, tokens = quantized_model_forward(input_ids, lm_head_w, attention_mask)
    jax.block_until_ready((logits, tokens))

    # Plain-JAX reference of the same math (same scalar ops -> bit-identical
    # quant grid; matmul compared at bf16 input precision, f32 accumulation).
    x_min = jnp.minimum(jnp.min(input_ids), 0.0)
    x_max = jnp.maximum(jnp.max(input_ids), 0.0)
    scale = jnp.maximum((x_max - x_min) / 255.0, 1e-8)
    inv_scale = 1.0 / scale
    zp = jnp.clip(jnp.round(-x_min * inv_scale), 0.0, 255.0)
    q_ref = jnp.clip(jnp.round(input_ids * inv_scale) + zp, 0.0, 255.0)
    dq_ref = (q_ref - zp) * scale
    logits_ref = jnp.einsum(
        'bsh,hv->bsv',
        dq_ref.astype(jnp.bfloat16).astype(jnp.float32),
        lm_head_w.astype(jnp.bfloat16).astype(jnp.float32))
    tok_ref = jnp.argmax(logits_ref, axis=-1).astype(jnp.int32)

    assert jnp.allclose(logits, logits_ref, atol=1e-3, rtol=1e-3)
    assert jnp.array_equal(tokens, tok_ref)

    print("KERNEL_OK")
</pallas_src>

<mosaic_0001>
module attributes {stable_mosaic.version = 11 : i64} {
  func.func @_quant_generate_kernel(%arg0: i32, %arg1: memref<16x32xf32, #tpu.memory_space<vmem>>, %arg2: memref<32x128xbf16, #tpu.memory_space<vmem>>, %arg3: memref<16x128xf32, #tpu.memory_space<vmem>>, %arg4: memref<1x16xi32, #tpu.memory_space<vmem>>) attributes {dimension_semantics = [#tpu.dimension_semantics<arbitrary>], iteration_bounds = array<i64: 1>, scalar_prefetch = 0 : i64, scratch_operands = 0 : i64, tpu.core_type = #tpu.core_type<tc>, window_params = [{pipeline_mode = #tpu.pipeline_mode<synchronous>, transform_indices = @transform_0, window_bounds = array<i64: 16, 32>}, {pipeline_mode = #tpu.pipeline_mode<synchronous>, transform_indices = @transform_1, window_bounds = array<i64: 32, 128>}, {pipeline_mode = #tpu.pipeline_mode<synchronous>, transform_indices = @transform_2, window_bounds = array<i64: 16, 128>}, {pipeline_mode = #tpu.pipeline_mode<synchronous>, transform_indices = @transform_3, window_bounds = array<i64: 1, 16>}]} {
    %c0 = arith.constant 0 : index
    %c0_0 = arith.constant 0 : index
    %0 = vector.load %arg1[%c0, %c0_0] : memref<16x32xf32, #tpu.memory_space<vmem>>, vector<16x32xf32>
    %cst = arith.constant dense<0xFF800000> : vector<16xf32>
    %1 = vector.multi_reduction <maximumf>, %0, %cst [1] : vector<16x32xf32> to vector<16xf32>
    %2 = vector.shape_cast %1 : vector<16xf32> to vector<16x1xf32>
    %cst_1 = arith.constant dense<0xFF800000> : vector<1xf32>
    %3 = vector.multi_reduction <maximumf>, %2, %cst_1 [0] : vector<16x1xf32> to vector<1xf32>
    %4 = vector.shape_cast %3 : vector<1xf32> to vector<1x1xf32>
    %cst_2 = arith.constant 0.000000e+00 : f32
    %5 = vector.broadcast %cst_2 : f32 to vector<1x1xf32>
    %6 = arith.maximumf %4, %5 : vector<1x1xf32>
    %cst_3 = arith.constant dense<0x7F800000> : vector<16xf32>
    %7 = vector.multi_reduction <minimumf>, %0, %cst_3 [1] : vector<16x32xf32> to vector<16xf32>
    %8 = vector.shape_cast %7 : vector<16xf32> to vector<16x1xf32>
    %cst_4 = arith.constant dense<0x7F800000> : vector<1xf32>
    %9 = vector.multi_reduction <minimumf>, %8, %cst_4 [0] : vector<16x1xf32> to vector<1xf32>
    %10 = vector.shape_cast %9 : vector<1xf32> to vector<1x1xf32>
    %cst_5 = arith.constant 0.000000e+00 : f32
    %11 = vector.broadcast %cst_5 : f32 to vector<1x1xf32>
    %12 = arith.minimumf %10, %11 : vector<1x1xf32>
    %13 = arith.subf %6, %12 : vector<1x1xf32>
    %cst_6 = arith.constant 2.550000e+02 : f32
    %14 = vector.broadcast %cst_6 : f32 to vector<1x1xf32>
    %15 = arith.divf %13, %14 : vector<1x1xf32>
    %cst_7 = arith.constant 9.99999993E-9 : f32
    %16 = vector.broadcast %cst_7 : f32 to vector<1x1xf32>
    %17 = arith.maximumf %15, %16 : vector<1x1xf32>
    %cst_8 = arith.constant 1.000000e+00 : f32
    %18 = vector.broadcast %cst_8 : f32 to vector<1x1xf32>
    %19 = arith.divf %18, %17 : vector<1x1xf32>
    %cst_9 = arith.constant 0.000000e+00 : f32
    %20 = vector.broadcast %cst_9 : f32 to vector<1x1xf32>
    %21 = arith.subf %20, %12 : vector<1x1xf32>
    %22 = arith.mulf %21, %19 : vector<1x1xf32>
    %23 = math.roundeven %22 : vector<1x1xf32>
    %cst_10 = arith.constant 0.000000e+00 : f32
    %cst_11 = arith.constant 2.550000e+02 : f32
    %24 = vector.broadcast %cst_10 : f32 to vector<1x1xf32>
    %25 = arith.maximumf %24, %23 : vector<1x1xf32>
    %26 = vector.broadcast %cst_11 : f32 to vector<1x1xf32>
    %27 = arith.minimumf %26, %25 : vector<1x1xf32>
    %28 = vector.broadcast %19 : vector<1x1xf32> to vector<16x32xf32>
    %29 = arith.mulf %0, %28 : vector<16x32xf32>
    %30 = math.roundeven %29 : vector<16x32xf32>
    %31 = vector.broadcast %27 : vector<1x1xf32> to vector<16x32xf32>
    %32 = arith.addf %30, %31 : vector<16x32xf32>
    %cst_12 = arith.constant 0.000000e+00 : f32
    %cst_13 = arith.constant 2.550000e+02 : f32
    %33 = vector.broadcast %cst_12 : f32 to vector<16x32xf32>
    %34 = arith.maximumf %33, %32 : vector<16x32xf32>
    %35 = vector.broadcast %cst_13 : f32 to vector<16x32xf32>
    %36 = arith.minimumf %35, %34 : vector<16x32xf32>
    %37 = vector.broadcast %27 : vector<1x1xf32> to vector<16x32xf32>
    %38 = arith.subf %36, %37 : vector<16x32xf32>
    %39 = vector.broadcast %17 : vector<1x1xf32> to vector<16x32xf32>
    %40 = arith.mulf %38, %39 : vector<16x32xf32>
    %41 = arith.truncf %40 : vector<16x32xf32> to vector<16x32xbf16>
    %c0_14 = arith.constant 0 : index
    %c0_15 = arith.constant 0 : index
    %42 = vector.load %arg2[%c0_14, %c0_15] : memref<32x128xbf16, #tpu.memory_space<vmem>>, vector<32x128xbf16>
    %cst_16 = arith.constant dense<0.000000e+00> : vector<16x128xf32>
    %43 = tpu.matmul %41, %42, %cst_16 {dimension_numbers = #tpu.dot_dimension_numbers<[1], [0], [0], [1], [0, 0, 1, 1], [], []>} : vector<16x32xbf16>, vector<32x128xbf16>, vector<16x128xf32> -> vector<16x128xf32>
    %c0_17 = arith.constant 0 : index
    %c0_18 = arith.constant 0 : index
    %44 = vector.load %arg3[%c0_17, %c0_18] : memref<16x128xf32, #tpu.memory_space<vmem>>, vector<16x128xf32>
    tpu.vector_store %arg3[%c0_17, %c0_18], %43 {strides = array<i32>} : memref<16x128xf32, #tpu.memory_space<vmem>>, vector<16x128xf32>,
    %45 = vector.shape_cast %43 : vector<16x128xf32> to vector<1x16x128xf32>
    %46 = tpu.reduce_index %45 {axis = 2 : i32, kind = #tpu.reduction_kind<arg_max>} : vector<1x16x128xf32> -> vector<1x16xi32>
    %c0_19 = arith.constant 0 : index
    %c0_20 = arith.constant 0 : index
    %47 = vector.load %arg4[%c0_19, %c0_20] : memref<1x16xi32, #tpu.memory_space<vmem>>, vector<1x16xi32>
    tpu.vector_store %arg4[%c0_19, %c0_20], %46 {strides = array<i32>} : memref<1x16xi32, #tpu.memory_space<vmem>>, vector<1x16xi32>,
    return
  }
  func.func @transform_0(%arg0: i32) -> (i32, i32) {
    %c0_i32 = arith.constant 0 : i32
    %c0_i32_0 = arith.constant 0 : i32
    %c0_i32_1 = arith.constant 0 : i32
    return %c0_i32, %c0_i32_0 : i32, i32
  }
  func.func @transform_1(%arg0: i32) -> (i32, i32) {
    %c0_i32 = arith.constant 0 : i32
    %c0_i32_0 = arith.constant 0 : i32
    %c0_i32_1 = arith.constant 0 : i32
    return %c0_i32, %c0_i32_0 : i32, i32
  }
  func.func @transform_2(%arg0: i32) -> (i32, i32) {
    %c0_i32 = arith.constant 0 : i32
    %c0_i32_0 = arith.constant 0 : i32
    %c0_i32_1 = arith.constant 0 : i32
    return %c0_i32, %c0_i32_0 : i32, i32
  }
  func.func @transform_3(%arg0: i32) -> (i32, i32) {
    %c0_i32 = arith.constant 0 : i32
    %c0_i32_0 = arith.constant 0 : i32
    %c0_i32_1 = arith.constant 0 : i32
    return %c0_i32, %c0_i32_0 : i32, i32
  }
}

</mosaic_0001>

<llo_original>
// kernel: tpu_custom_call.1
$region0: #{tpu_custom_call.1}
  #allocation0 [shape = 'u32[]', space=smem, size = 0x4, offset = 0x4, fixed_abs, tag = 'smem constant byte address 0x4 - core index']
  #allocation1 [shape = 'u32[144,128]{1,0:T(1,128)}', space=vmem, size = 0x12000, scoped, tag = 'internal scratch']
  %s0 = inlined_call_operand.hbm [shape: f32[16,32], index: 0, kind: input, shape index: {}]
  %s1 = inlined_call_operand.hbm [shape: bf16[32,128], index: 1, kind: input, shape index: {}]
  %s2 = inlined_call_operand.hbm [shape: f32[16,128], index: 2, kind: output, shape index: {0}]
  %s3 = inlined_call_operand.hbm [shape: s32[1,16], index: 3, kind: output, shape index: {1}]
  %4 = xla_tuple %s2, %s3
  %s5 = sld [smem:[#allocation0]]
  $region34: #{tpu_custom_call.1} parent=0
    _
  %s7 = ssub.s32 1, %s5
  %s8 = scalar_select 0, %s7, %s5
  $region1: #{tpu_custom_call.1} parent=0
    #allocation2 [shape = 'u8[8192]{0}', space=vmem, size = 0x2000, scoped, tag = 'input window, operand 0, single buffered']
    #allocation3 [shape = 's32[1]{0}', space=sflag, size = 0x4, scoped, tag = 'scoped memory for tpu_custom_call.1']
    #allocation4 [shape = 's32[1]{0}', space=sflag, size = 0x4, scoped, tag = 'scoped memory for tpu_custom_call.1']
    #allocation5 [shape = 'u8[8192]{0}', space=vmem, size = 0x2000, scoped, tag = 'input window, operand 1, single buffered']
    #allocation6 [shape = 's32[1]{0}', space=sflag, size = 0x4, scoped, tag = 'scoped memory for tpu_custom_call.1']
    #allocation7 [shape = 'u8[8192]{0}', space=vmem, size = 0x2000, scoped, tag = 'output window, operand 0, single buffered']
    #allocation8 [shape = 'u8[512]{0}', space=vmem, size = 0x400, scoped, tag = 'output window, operand 1, single buffered']
    #allocation9 [shape = 's32[1]{0}', space=sflag, size = 0x4, scoped, tag = 'scoped memory for tpu_custom_call.1']
    %9 = vsyncpa [#allocation3], 0
    %10 = vsyncpa [#allocation6], 0
    %11 = vsyncpa [#allocation4], 0
    %12 = vsyncpa [#allocation9], 0
    // Predicated region
    $region2: #{tpu_custom_call.1} parent=1 // pred_check
      _
    $region3: #{tpu_custom_call.1} parent=1 // pred_check_branch
      %14 = sbr.rel (0) target = $region5
    $region4: #{tpu_custom_call.1} parent=1 // pred_region
      %s16 = ssub.s32 256, 256
      %17 = vsyncadd [#allocation3], %s16
      %s18 = sshll.u32 [#allocation2], 4
      %s19 = int_to_ptr.vmem [resolvable:$true] %s18
      %24 = dma.hbm_to_vmem [thread:$0]  %s0, 256, %s19, [#allocation3], 128, 128, 8
    $region5: #{tpu_custom_call.1} parent=1 // pred_fallthru
      _
    // Predicated region
    $region6: #{tpu_custom_call.1} parent=1 // pred_check
      _
    $region7: #{tpu_custom_call.1} parent=1 // pred_check_branch
      %26 = sbr.rel (0) target = $region9
    $region8: #{tpu_custom_call.1} parent=1 // pred_region
      %s28 = ssub.s32 256, 256
      %29 = vsyncadd [#allocation6], %s28
      %s30 = sshll.u32 [#allocation5], 4
      %s31 = int_to_ptr.vmem [resolvable:$true] %s30
      %36 = dma.hbm_to_vmem [thread:$0]  %s1, 256, %s31, [#allocation6], 64, 64, 4
    $region9: #{tpu_custom_call.1} parent=1 // pred_fallthru
      _
    // Predicated region
    $region10: #{tpu_custom_call.1} parent=1 // pred_check
      _
    $region11: #{tpu_custom_call.1} parent=1 // pred_check_branch
      %38 = sbr.rel (0) target = $region13
    $region12: #{tpu_custom_call.1} parent=1 // pred_region
      %39 = dma.done [#allocation3], 256
    $region13: #{tpu_custom_call.1} parent=1 // pred_fallthru
      _
    // Predicated region
    $region14: #{tpu_custom_call.1} parent=1 // pred_check
      _
    $region15: #{tpu_custom_call.1} parent=1 // pred_check_branch
      %41 = sbr.rel (0) target = $region17
    $region16: #{tpu_custom_call.1} parent=1 // pred_region
      %42 = dma.done [#allocation6], 256
    $region17: #{tpu_custom_call.1} parent=1 // pred_fallthru
      _
    %v44 = vld [vmem:[#allocation2] sm:$0xff]
    %v45 = vld [vmem:[#allocation2 + $0x8] sm:$0xff]
    %vm46 = vcmask 261120
    %v47 = vsel %vm46, %v44, -inf
    %48 = vmax.xlane.f32.xlu0 %v47
    %v49 = vpop.xlane.xlu0 %48
    %v50 = vsel %vm46, %v45, -inf
    %51 = vmax.xlane.f32.xlu0 %v50
    %v52 = vpop.xlane.xlu0 %51
    %v53 = vmax.f32 %v49, %v52
    %v54 = vrot.slane %v53, 4
    %v55 = vmax.f32 %v53, %v54
    %v56 = vrot.slane %v55, 2
    %v57 = vmax.f32 %v55, %v56
    %v58 = vrot.slane %v57, 1
    %v59 = vmax.f32 %v57, %v58
    %v60 = vmax.f32 %v59, 0.0
    %v61 = vsel %vm46, %v44, inf
    %62 = vmin.xlane.f32.xlu0 %v61
    %v63 = vpop.xlane.xlu0 %62
    %v64 = vsel %vm46, %v45, inf
    %65 = vmin.xlane.f32.xlu0 %v64
    %v66 = vpop.xlane.xlu0 %65
    %v67 = vmin.f32 %v63, %v66
    %v68 = vrot.slane %v67, 4
    %v69 = vmin.f32 %v67, %v68
    %v70 = vrot.slane %v69, 2
    %v71 = vmin.f32 %v69, %v70
    %v72 = vrot.slane %v71, 1
    %v73 = vmin.f32 %v71, %v72
    %v74 = vmin.f32 %v73, 0.0
    %v75 = vsub.f32 %v60, %v74
    %v76 = vrcp.pop 255.0
    %v77 = vmul.f32 %v75, %v76
    %v78 = vmax.f32 %v77, 1e-08
    %v79 = vrcp.pop %v78
    %v80 = vmul.f32 1.0, %v79
    %v81 = vsub.f32 0.0, %v74
    %v82 = vmul.f32 %v81, %v80
    %v83 = vround.ne.pseudo %v82
    %v84 = vmax.f32 %v83, 0.0
    %v85 = vmin.f32 %v84, 255.0
    %v86 = vmul.f32 %v44, %v80
    %v87 = vmul.f32 %v45, %v80
    %v88 = vround.ne.pseudo %v86
    %v89 = vround.ne.pseudo %v87
    %v90 = vadd.f32 %v88, %v85
    %v91 = vadd.f32 %v89, %v85
    %v92 = vmax.f32 %v90, 0.0
    %v93 = vmax.f32 %v91, 0.0
    %v94 = vmin.f32 %v92, 255.0
    %v95 = vmin.f32 %v93, 255.0
    %v96 = vsub.f32 %v94, %v85
    %v97 = vsub.f32 %v95, %v85
    %v98 = vmul.f32 %v96, %v78
    %v99 = vmul.f32 %v97, %v78
    %v100 = vpack.c.bf16 %v99, %v98
    %v101 = vld [vmem:[#allocation5] sm:$0xf]
    %v102 = vld [vmem:[#allocation5 + $0x4] sm:$0xf]
    %v103 = vld [vmem:[#allocation5 + $0x8] sm:$0xf]
    %v104 = vld [vmem:[#allocation5 + $0xc] sm:$0xf]
    %v109 = vunpack.c.l.b16 %v101
    %v110 = vunpack.c.l.b16 %v102
    %v111 = vunpack.c.l.b16 %v103
    %v112 = vunpack.c.l.b16 %v104
    %v113 = vpack.c.b16 %v110, %v109
    %v114 = vpack.c.b16 %v112, %v111
    %v118 = vsel %vm46, %v100, 0
    %120 = vmatprep.subr.bf16.mxu0 0
    %121 = vmatpush1.bf16.msra.mxu0 %v113
    %122 = vmatprep.subr.bf16.mxu0 0
    %123 = vmatpush1.bf16.msra.mxu0 %v114
    %124 = vmatprep.subr.bf16.mxu0 0
    %125 = vmatpush1.bf16.msra.mxu0 0
    %126 = vmatprep.subr.bf16.mxu0 0
    %127 = vmatpush1.bf16.msra.mxu0 0
    %128 = vmatprep.subr.bf16.mxu0 0
    %129 = vmatpush1.bf16.msra.mxu0 0
    %130 = vmatprep.subr.bf16.mxu0 0
    %131 = vmatpush1.bf16.msra.mxu0 0
    %132 = vmatprep.subr.bf16.mxu0 0
    %133 = vmatpush1.bf16.msra.mxu0 0
    %134 = vmatprep.subr.bf16.mxu0 0
    %135 = vmatpush1.bf16.msra.mxu0 0
    %136 = vmatprep.subr.bf16.mxu0 0
    %137 = vmatpush1.bf16.msra.mxu0 0
    %138 = vmatprep.subr.bf16.mxu0 0
    %139 = vmatpush1.bf16.msra.mxu0 0
    %140 = vmatprep.subr.bf16.mxu0 0
    %141 = vmatpush1.bf16.msra.mxu0 0
    %142 = vmatprep.subr.bf16.mxu0 0
    %143 = vmatpush1.bf16.msra.mxu0 0
    %144 = vmatprep.subr.bf16.mxu0 0
    %145 = vmatpush1.bf16.msra.mxu0 0
    %146 = vmatprep.subr.bf16.mxu0 0
    %147 = vmatpush1.bf16.msra.mxu0 0
    %148 = vmatprep.subr.bf16.mxu0 0
    %149 = vmatpush1.bf16.msra.mxu0 0
    %150 = vmatprep.subr.bf16.mxu0 0
    %151 = vmatpush1.bf16.msra.mxu0 0
    %152 = vmatprep.mubr.bf16.mxu0 0
    %153 = vmatmul.mubr.bf16.gmra.mrb[0].mxu0 %v118
    %v154 = vpop.f32.mrb[0].mxu0
    %v155 = vadd.f32 0.0, %v154
    %v156 = vpop.f32.mrb[0].mxu0
    %v157 = vpop.f32.mrb[0].mxu0
    %v158 = vadd.f32 0.0, %v157
    %v159 = vpop.f32.mrb[0].mxu0
    %160 = vdwg.mxu0
    %161 = vst [vmem:[#allocation7] sm:$0xff] %v155
    %162 = vst [vmem:[#allocation7 + $0x8] sm:$0xff] %v158
    %163 = vmax.index.xlane.f32.xlu0 %v155
    %v164 = vpop.xlane.xlu0 %163
    %165 = vmax.index.xlane.f32.xlu0 %v158
    %v166 = vpop.xlane.xlu0 %165
    %v167 = vlaneseq
    %v168 = vand.u32 %v167, 127
    %v169 = vlaneseq
    %v170 = vshrl.u32 %v169, 7
    %v171 = vsub.s32 %v168, %v170
    %v172 = vrot.slane %v164, %v171
    %v173 = vadd.s32 %v168, 4294967288
    %v174 = vlaneseq
    %v175 = vshrl.u32 %v174, 7
    %v176 = vsub.s32 %v173, %v175
    %v177 = vrot.slane %v166, %v176
    %vm178 = vcmask 130112
    %v179 = vsel %vm178, %v177, %v172
    %vm180 = vcmask 122880
    %181 = vst.msk [vmem:[#allocation8] sm:$0x1] %vm180, %v179
    // Predicated region
    $region18: #{tpu_custom_call.1} parent=1 // pred_check
      _
    $region19: #{tpu_custom_call.1} parent=1 // pred_check_branch
      %183 = sbr.rel (0) target = $region21
    $region20: #{tpu_custom_call.1} parent=1 // pred_region
      %s185 = ssub.s32 256, 256
      %186 = vsyncadd [#allocation4], %s185
      %s187 = sshll.u32 [#allocation7], 4
      %s188 = int_to_ptr.vmem [resolvable:$true] %s187
      %193 = dma.vmem_to_hbm [thread:$0]  %s188, 256, %s2, [#allocation4], 128, 128, 8
    $region21: #{tpu_custom_call.1} parent=1 // pred_fallthru
      _
    // Predicated region
    $region22: #{tpu_custom_call.1} parent=1 // pred_check
      _
    $region23: #{tpu_custom_call.1} parent=1 // pred_check_branch
      %195 = sbr.rel (0) target = $region25
    $region24: #{tpu_custom_call.1} parent=1 // pred_region
      %s197 = ssub.s32 16, 16
      %198 = vsyncadd [#allocation9], %s197
      %s200 = sshll.u32 [#allocation8], 4
      %s201 = int_to_ptr.vmem [resolvable:$true] %s200
      %203 = dma.vmem_to_hbm [thread:$0]  %s201, 16, %s3, [#allocation9]
    $region25: #{tpu_custom_call.1} parent=1 // pred_fallthru
      _
    // Predicated region
    $region26: #{tpu_custom_call.1} parent=1 // pred_check
      _
    $region27: #{tpu_custom_call.1} parent=1 // pred_check_branch
      %205 = sbr.rel (0) target = $region29
    $region28: #{tpu_custom_call.1} parent=1 // pred_region
      %206 = dma.done [#allocation4], 256
    $region29: #{tpu_custom_call.1} parent=1 // pred_fallthru
      _
    // Predicated region
    $region30: #{tpu_custom_call.1} parent=1 // pred_check
      _
    $region31: #{tpu_custom_call.1} parent=1 // pred_check_branch
      %208 = sbr.rel (0) target = $region33
    $region32: #{tpu_custom_call.1} parent=1 // pred_region
      %209 = dma.done [#allocation9], 16
    $region33: #{tpu_custom_call.1} parent=1 // pred_fallthru
      _
    %210 = vsyncpa [#allocation3], 1
    %211 = vsyncpa [#allocation6], 1
    %212 = vsyncpa [#allocation4], 1
    %213 = vsyncpa [#allocation9], 1

</llo_original>
